<compile_context>
chip_gen: v5e
topology: v5e:2x2
jax: 0.10.0
libtpu: 0.0.40
codegen_flags: <defaults>
</compile_context>

<pallas_src>
import jax
import jax.numpy as jnp
from jax.experimental import pallas as pl
from jax.experimental.pallas import tpu as pltpu


def _implicit_mul_kernel(imp_ref, x_ref, o_ref):
    # imp_ref: (row_tile, 1); x_ref / o_ref: (row_tile, hw_tile)
    # Per-row scale broadcasts along the lane (last) axis only -> cheap VPU mul.
    o_ref[...] = (imp_ref[...] * x_ref[...]).astype(o_ref.dtype)


def _sublane_multiple(x_dtype, out_dtype) -> int:
    # f32 vreg = 8 sublanes; packed dtypes (bf16 / int8) pack 2x / 4x deeper.
    min_itemsize = min(jnp.dtype(x_dtype).itemsize, jnp.dtype(out_dtype).itemsize)
    return max(8, 32 // min_itemsize)


def _pick_tiles(rows: int, hw: int, itemsize: int, sub: int,
                max_block_bytes: int):
    """Pick (row_tile, hw_tile).

    Prefer full-HW blocks (one contiguous HBM region per block) and split
    rows along sublane multiples; only split HW (128-lane multiples) when a
    single minimal row slab is still over budget."""
    if hw * itemsize * min(sub, rows) <= max_block_bytes:
        hw_tile = hw
        fit_rows = max_block_bytes // (hw * itemsize)
        if fit_rows >= rows:
            row_tile = rows                       # whole array in one block
        else:
            row_tile = max(sub, (fit_rows // sub) * sub)
        return min(row_tile, rows), hw_tile
    row_tile = rows if rows < sub else sub
    fit_hw = max_block_bytes // (row_tile * itemsize)
    hw_tile = max(128, (fit_hw // 128) * 128)
    return row_tile, min(hw_tile, hw)


def implicit_mul(x: jax.Array, implicit: jax.Array, *,
                 force_pallas: bool = False,
                 max_block_bytes: int = 4 * 1024 * 1024,
                 tiny_bytes_threshold: int = 256 * 1024) -> jax.Array:
    """ImplicitMul forward: out = implicit * x.
    x: (N, C, H, W), implicit: (1, C, 1, 1)."""
    N, C, H, W = x.shape
    assert implicit.shape == (1, C, 1, 1)

    # Match PyTorch/jnp promotion (intentional: f32 param * bf16 act -> f32).
    out_dtype = jnp.result_type(x.dtype, implicit.dtype)
    itemsize = jnp.dtype(out_dtype).itemsize

    # Tiny inputs: fixed pallas_call / pipeline overhead dwarfs the traffic;
    # let XLA fuse the broadcast-multiply instead.
    total_bytes = x.size * jnp.dtype(x.dtype).itemsize + x.size * itemsize
    if not force_pallas and total_bytes < tiny_bytes_threshold:
        return implicit * x

    HW = H * W
    rows = N * C

    # Contiguous row-slab layout (free reshapes on row-major data).
    x2 = x.reshape(rows, HW)
    imp_rows = jnp.broadcast_to(
        implicit.reshape(1, C, 1).astype(out_dtype), (N, C, 1)).reshape(rows, 1)

    sub = _sublane_multiple(x.dtype, out_dtype)
    row_tile, hw_tile = _pick_tiles(rows, HW, itemsize, sub, max_block_bytes)
    grid = (pl.cdiv(rows, row_tile), pl.cdiv(HW, hw_tile))

    out = pl.pallas_call(
        _implicit_mul_kernel,
        out_shape=jax.ShapeDtypeStruct((rows, HW), out_dtype),
        grid_spec=pltpu.PrefetchScalarGridSpec(
            num_scalar_prefetch=0,
            grid=grid,
            in_specs=[
                # tiny per-row scale (row_tile elements per step)
                pl.BlockSpec((row_tile, 1), lambda i, j: (i, 0)),
                # contiguous row slab of the input
                pl.BlockSpec((row_tile, hw_tile), lambda i, j: (i, j)),
            ],
            out_specs=pl.BlockSpec((row_tile, hw_tile), lambda i, j: (i, j)),
        ),
        compiler_params=pltpu.CompilerParams(
            # Both axes independent; leading axis has the high trip count so
            # v7x megacore sharding keeps both TensorCores busy.
            dimension_semantics=("parallel", "parallel"),
            # 2x(in)+2x(out) double-buffered ~4 MiB blocks (~16 MiB) + slack:
            # fits v7x's 64 MiB part; raise is mandatory over v5e's 16 MiB
            # scoped default, safe everywhere.
            vmem_limit_bytes=32 * 1024 * 1024,
        ),
        cost_estimate=pl.CostEstimate(
            flops=rows * HW,
            transcendentals=0,
            bytes_accessed=(x.size * jnp.dtype(x.dtype).itemsize
                            + x.size * itemsize + rows * itemsize),
        ),
    )(imp_rows, x2)

    return out.reshape(N, C, H, W)


if __name__ == "__main__":
    key = jax.random.PRNGKey(0)
    k_imp, k_x, k_x2, k_x4 = jax.random.split(key, 4)
    mean, std = 1.0, 0.02  # nn.init.normal_(implicit, mean=1.0, std=0.02)

    # 1) Module demo shape (N=2, C=4, H=W=16), forced through the Pallas path.
    N, C, H, W = 2, 4, 16, 16
    implicit = mean + std * jax.random.normal(k_imp, (1, C, 1, 1), jnp.float32)
    x = jax.random.normal(k_x, (N, C, H, W), jnp.float32)
    out = jax.block_until_ready(implicit_mul(x, implicit, force_pallas=True))
    ref = implicit * x
    assert out.shape == ref.shape and out.dtype == ref.dtype
    assert jnp.allclose(out, ref, atol=1e-6, rtol=1e-6)

    # 2) Non-divisible rows (N*C=36) and HW%128 != 0 (20x20=400): small block
    #    budget forces ragged row tail blocks.
    N2, C2, H2, W2 = 1, 36, 20, 20
    imp2 = mean + std * jax.random.normal(k_imp, (1, C2, 1, 1), jnp.float32)
    x2 = jax.random.normal(k_x2, (N2, C2, H2, W2), jnp.float32)
    out2 = jax.block_until_ready(
        implicit_mul(x2, imp2, force_pallas=True, max_block_bytes=16 * 1024))
    assert jnp.allclose(out2, imp2 * x2, atol=1e-6, rtol=1e-6)

    # 3) Even smaller budget forces an HW split with a ragged lane tail.
    out3 = jax.block_until_ready(
        implicit_mul(x2, imp2, force_pallas=True, max_block_bytes=8 * 1024))
    assert jnp.allclose(out3, imp2 * x2, atol=1e-6, rtol=1e-6)

    # 4) bf16 activations with f32 implicit (PyTorch-style promotion to f32).
    N4, C4, H4, W4 = 2, 16, 16, 16
    imp4 = mean + std * jax.random.normal(k_imp, (1, C4, 1, 1), jnp.float32)
    x4 = jax.random.normal(k_x4, (N4, C4, H4, W4), jnp.float32).astype(jnp.bfloat16)
    out4 = jax.block_until_ready(implicit_mul(x4, imp4, force_pallas=True))
    ref4 = imp4 * x4
    assert out4.shape == ref4.shape and out4.dtype == ref4.dtype
    assert jnp.allclose(out4, ref4, atol=1e-2, rtol=1e-2)

    print("KERNEL_OK")
</pallas_src>

<mosaic_0001>
module attributes {stable_mosaic.version = 11 : i64} {
  func.func @_implicit_mul_kernel(%arg0: i32, %arg1: i32, %arg2: memref<8x1xf32, #tpu.memory_space<vmem>>, %arg3: memref<8x256xf32, #tpu.memory_space<vmem>>, %arg4: memref<8x256xf32, #tpu.memory_space<vmem>>) attributes {dimension_semantics = [#tpu.dimension_semantics<parallel>, #tpu.dimension_semantics<parallel>], iteration_bounds = array<i64: 1, 1>, scalar_prefetch = 0 : i64, scratch_operands = 0 : i64, tpu.core_type = #tpu.core_type<tc>, window_params = [{transform_indices = @transform_0, window_bounds = array<i64: 8, 1>}, {transform_indices = @transform_1, window_bounds = array<i64: 8, 256>}, {transform_indices = @transform_2, window_bounds = array<i64: 8, 256>}]} {
    %c0 = arith.constant 0 : index
    %c0_0 = arith.constant 0 : index
    %0 = vector.load %arg2[%c0, %c0_0] : memref<8x1xf32, #tpu.memory_space<vmem>>, vector<8x1xf32>
    %c0_1 = arith.constant 0 : index
    %c0_2 = arith.constant 0 : index
    %1 = vector.load %arg3[%c0_1, %c0_2] : memref<8x256xf32, #tpu.memory_space<vmem>>, vector<8x256xf32>
    %2 = vector.broadcast %0 : vector<8x1xf32> to vector<8x256xf32>
    %3 = arith.mulf %2, %1 : vector<8x256xf32>
    %c0_3 = arith.constant 0 : index
    %c0_4 = arith.constant 0 : index
    %4 = vector.load %arg4[%c0_3, %c0_4] : memref<8x256xf32, #tpu.memory_space<vmem>>, vector<8x256xf32>
    tpu.vector_store %arg4[%c0_3, %c0_4], %3 {strides = array<i32>} : memref<8x256xf32, #tpu.memory_space<vmem>>, vector<8x256xf32>,
    return
  }
  func.func @transform_0(%arg0: i32, %arg1: i32) -> (i32, i32) {
    %c0_i32 = arith.constant 0 : i32
    %c0_i32_0 = arith.constant 0 : i32
    return %arg0, %c0_i32 : i32, i32
  }
  func.func @transform_1(%arg0: i32, %arg1: i32) -> (i32, i32) {
    %c0_i32 = arith.constant 0 : i32
    return %arg0, %arg1 : i32, i32
  }
  func.func @transform_2(%arg0: i32, %arg1: i32) -> (i32, i32) {
    %c0_i32 = arith.constant 0 : i32
    return %arg0, %arg1 : i32, i32
  }
}

</mosaic_0001>

<llo_original>
// kernel: tpu_custom_call.1
$region0: #{tpu_custom_call.1}
  #allocation0 [shape = 'u32[]', space=smem, size = 0x4, offset = 0x4, fixed_abs, tag = 'smem constant byte address 0x4 - core index']
  #allocation1 [shape = 'u32[72,128]{1,0:T(1,128)}', space=vmem, size = 0x9000, scoped, tag = 'internal scratch']
  %s0 = inlined_call_operand.vmem [shape: f32[8,1], index: 0, kind: input, shape index: {}]
  %s1 = inlined_call_operand.hbm [shape: f32[8,256], index: 1, kind: input, shape index: {}]
  %s2 = inlined_call_operand.hbm [shape: f32[8,256], index: 2, kind: output, shape index: {}]
  %s3 = sld [smem:[#allocation0]]
  $region22: #{tpu_custom_call.1} parent=0
    _
  %s5 = ssub.s32 1, %s3
  %s6 = scalar_select 0, %s5, %s3
  $region1: #{tpu_custom_call.1} parent=0
    #allocation2 [shape = 'u8[8192]{0}', space=vmem, size = 0x2000, scoped, tag = 'input window, operand 1, single buffered']
    #allocation3 [shape = 's32[1]{0}', space=sflag, size = 0x4, scoped, tag = 'scoped memory for tpu_custom_call.1']
    #allocation4 [shape = 's32[1]{0}', space=sflag, size = 0x4, scoped, tag = 'scoped memory for tpu_custom_call.1']
    #allocation5 [shape = 'u8[8192]{0}', space=vmem, size = 0x2000, scoped, tag = 'output window, operand 0, single buffered']
    %7 = vsyncpa [#allocation3], 0
    %8 = vsyncpa [#allocation4], 0
    // Predicated region
    $region2: #{tpu_custom_call.1} parent=1 // pred_check
      _
    $region3: #{tpu_custom_call.1} parent=1 // pred_check_branch
      %10 = sbr.rel (0) target = $region5
    $region4: #{tpu_custom_call.1} parent=1 // pred_region
      _
    $region5: #{tpu_custom_call.1} parent=1 // pred_fallthru
      _
    // Predicated region
    $region6: #{tpu_custom_call.1} parent=1 // pred_check
      _
    $region7: #{tpu_custom_call.1} parent=1 // pred_check_branch
      %12 = sbr.rel (0) target = $region9
    $region8: #{tpu_custom_call.1} parent=1 // pred_region
      %14 = vsyncadd [#allocation3], 0
      %s16 = sshll.u32 %s1, 4
      %s17 = int_to_ptr.hbm [resolvable:$true] %s16
      %s18 = sshll.u32 [#allocation2], 4
      %s19 = int_to_ptr.vmem [resolvable:$true] %s18
      %21 = dma.hbm_to_vmem [thread:$0]  %s17, 256, %s19, [#allocation3]
    $region9: #{tpu_custom_call.1} parent=1 // pred_fallthru
      _
    // Predicated region
    $region10: #{tpu_custom_call.1} parent=1 // pred_check
      _
    $region11: #{tpu_custom_call.1} parent=1 // pred_check_branch
      %23 = sbr.rel (0) target = $region13
    $region12: #{tpu_custom_call.1} parent=1 // pred_region
      %25 = dma.done [#allocation3], 256
    $region13: #{tpu_custom_call.1} parent=1 // pred_fallthru
      _
    %v26 = vld [vmem:[%s0] sm:$0xff]
    %v27 = vld [vmem:[#allocation2] sm:$0xff]
    %v28 = vld [vmem:[#allocation2 + $0x8] sm:$0xff]
    %30 = vset.pattern.permute.xlu0 0
    %31 = vperm.xlu0 %30, %v26
    %v32 = vpop.permute.xlu0 %31
    %v34 = vmul.f32 %v32, %v27
    %v35 = vmul.f32 %v32, %v28
    %36 = vst [vmem:[#allocation5] sm:$0xff] %v34
    %37 = vst [vmem:[#allocation5 + $0x8] sm:$0xff] %v35
    // Predicated region
    $region14: #{tpu_custom_call.1} parent=1 // pred_check
      _
    $region15: #{tpu_custom_call.1} parent=1 // pred_check_branch
      %39 = sbr.rel (0) target = $region17
    $region16: #{tpu_custom_call.1} parent=1 // pred_region
      %41 = vsyncadd [#allocation4], 0
      %s43 = sshll.u32 [#allocation5], 4
      %s44 = int_to_ptr.vmem [resolvable:$true] %s43
      %s45 = sshll.u32 %s2, 4
      %s46 = int_to_ptr.hbm [resolvable:$true] %s45
      %48 = dma.vmem_to_hbm [thread:$0]  %s44, 256, %s46, [#allocation4]
    $region17: #{tpu_custom_call.1} parent=1 // pred_fallthru
      _
    // Predicated region
    $region18: #{tpu_custom_call.1} parent=1 // pred_check
      _
    $region19: #{tpu_custom_call.1} parent=1 // pred_check_branch
      %50 = sbr.rel (0) target = $region21
    $region20: #{tpu_custom_call.1} parent=1 // pred_region
      %52 = dma.done [#allocation4], 256
    $region21: #{tpu_custom_call.1} parent=1 // pred_fallthru
      _
    %53 = vsyncpa [#allocation3], 1
    %54 = vsyncpa [#allocation4], 1

</llo_original>
